<compile_context>
chip_gen: v7x
topology: tpu7x:2x2x1
jax: 0.10.0
libtpu: 0.0.40
codegen_flags: <defaults>
</compile_context>

<pallas_src>
import numpy as np
import jax
import jax.numpy as jnp
from jax.experimental import pallas as pl
from jax.experimental.pallas import tpu as pltpu


def pg_discrete_policy_kernel(xT_ref, w1_ref, b1_ref, w2_ref, b2_ref,
                              w3_ref, b3_ref, act_ref, out_ref):
    """One batch tile: xT [S, bm] bf16, weights [out, in] bf16, biases [out, 1] f32,
    act [1, bm] int32, out [1, bm] f32.  Batch is in lanes end-to-end."""
    xT = xT_ref[...]                                                    # bf16 [S, bm]
    h1 = jnp.maximum(
        jnp.dot(w1_ref[...], xT, preferred_element_type=jnp.float32)
        + b1_ref[...], 0.0)                                             # f32 [H, bm]
    h2 = jnp.maximum(
        jnp.dot(w2_ref[...], h1.astype(jnp.bfloat16),
                preferred_element_type=jnp.float32)
        + b2_ref[...], 0.0)                                             # f32 [H, bm]
    logits = (jnp.dot(w3_ref[...], h2.astype(jnp.bfloat16),
                      preferred_element_type=jnp.float32)
              + b3_ref[...])                                            # f32 [A, bm]

    # softmax over the action axis (sublane axis 0) per sample (per lane),
    # computed as a stable log-softmax: log(softmax(x)) == x - max - logsumexp.
    m = jnp.max(logits, axis=0, keepdims=True)                          # [1, bm]
    z = logits - m
    lse = jnp.log(jnp.sum(jnp.exp(z), axis=0, keepdims=True))           # [1, bm]
    log_sm = z - lse                                                    # [A, bm]

    # gather(probs, 1, action) via a one-hot select along the sublane axis.
    a_iota = jax.lax.broadcasted_iota(jnp.int32, logits.shape, 0)       # [A, bm]
    picked = jnp.where(a_iota == act_ref[...], log_sm, 0.0)             # [A, bm]
    out_ref[...] = jnp.sum(picked, axis=0, keepdims=True)               # [1, bm] lane-dense


def pg_discrete_policy_forward(state, action, params, *, bm=128):
    """state: [B, S] f32, action: [B] int (class indices), params: PyTorch-layout
    weights w*: [out, in], b*: [out].  Returns log-probs with shape [B, 1]."""
    B, S = state.shape
    H = params["w1"].shape[0]
    A = params["w3"].shape[0]

    nb = pl.cdiv(B, bm)
    B_pad = nb * bm
    if B_pad != B:
        state = jnp.pad(state, ((0, B_pad - B), (0, 0)))
        action = jnp.pad(action, (0, B_pad - B))

    # Transposed, lane-dense layouts + bf16 MXU inputs (biases stay f32).
    xT = state.T.astype(jnp.bfloat16)                                   # [S, B_pad]
    act = action.astype(jnp.int32).reshape(1, B_pad)                    # [1, B_pad]
    w1 = params["w1"].astype(jnp.bfloat16)                              # [H, S]
    w2 = params["w2"].astype(jnp.bfloat16)                              # [H, H]
    w3 = params["w3"].astype(jnp.bfloat16)                              # [A, H]
    b1 = params["b1"].reshape(H, 1).astype(jnp.float32)
    b2 = params["b2"].reshape(H, 1).astype(jnp.float32)
    b3 = params["b3"].reshape(A, 1).astype(jnp.float32)

    const = lambda i: (0, 0)          # weights/biases resident across grid steps
    batch = lambda i: (0, i)          # batch tile advances along lanes

    out = pl.pallas_call(
        pg_discrete_policy_kernel,
        out_shape=jax.ShapeDtypeStruct((1, B_pad), jnp.float32),
        grid_spec=pltpu.PrefetchScalarGridSpec(
            num_scalar_prefetch=0,
            grid=(nb,),
            in_specs=[
                pl.BlockSpec((S, bm), batch),     # x^T
                pl.BlockSpec((H, S), const),      # w1
                pl.BlockSpec((H, 1), const),      # b1
                pl.BlockSpec((H, H), const),      # w2
                pl.BlockSpec((H, 1), const),      # b2
                pl.BlockSpec((A, H), const),      # w3
                pl.BlockSpec((A, 1), const),      # b3
                pl.BlockSpec((1, bm), batch),     # action ids
            ],
            out_specs=pl.BlockSpec((1, bm), batch),
        ),
        compiler_params=pltpu.CompilerParams(
            dimension_semantics=("parallel",)),   # batch shards across TCs on v7x
    )(xT, w1, b1, w2, b2, w3, b3, act)

    return out.reshape(B_pad)[:B].reshape(B, 1)   # matches torch.log(gather(...)) shape


def make_params(key, state_size, hidden, actions):
    ks = jax.random.split(key, 6)

    def lin(kw, kb, n_out, n_in):
        w = jax.random.normal(kw, (n_out, n_in), jnp.float32) * 0.1   # [out, in] (PyTorch)
        b = jax.random.normal(kb, (n_out,), jnp.float32) * 0.1
        return w, b

    w1, b1 = lin(ks[0], ks[1], hidden, state_size)
    w2, b2 = lin(ks[2], ks[3], hidden, hidden)
    w3, b3 = lin(ks[4], ks[5], actions, hidden)
    return dict(w1=w1, b1=b1, w2=w2, b2=b2, w3=w3, b3=b3)


def reference_forward(state, action, p):
    """Pure-JAX reference mirroring the kernel's precision (bf16 matmul inputs,
    f32 accumulation / element-wise), same math as the PyTorch forward."""
    x = state.astype(jnp.bfloat16)
    h1 = jnp.maximum(jnp.dot(x, p["w1"].T.astype(jnp.bfloat16),
                             preferred_element_type=jnp.float32) + p["b1"][None, :], 0.0)
    h2 = jnp.maximum(jnp.dot(h1.astype(jnp.bfloat16), p["w2"].T.astype(jnp.bfloat16),
                             preferred_element_type=jnp.float32) + p["b2"][None, :], 0.0)
    logits = jnp.dot(h2.astype(jnp.bfloat16), p["w3"].T.astype(jnp.bfloat16),
                     preferred_element_type=jnp.float32) + p["b3"][None, :]
    log_sm = jax.nn.log_softmax(logits, axis=1)       # == log(softmax(dim=1))
    return jnp.take_along_axis(log_sm, action.reshape(-1, 1).astype(jnp.int32), axis=1)


if __name__ == "__main__":
    # hidden=128 matches the module's default hidden_layer=128 and fills the
    # 128-lane vreg; batch is a multiple of the 128-row tile so the 1-D grid
    # (and "parallel" semantics) is actually exercised.
    B, STATE, HIDDEN, ACTIONS = 512, 16, 128, 8
    key = jax.random.PRNGKey(0)
    k_state, k_action, k_params = jax.random.split(key, 3)

    state = jax.random.normal(k_state, (B, STATE), jnp.float32)
    action = jax.random.randint(k_action, (B,), 0, ACTIONS, jnp.int32)
    params = make_params(k_params, STATE, HIDDEN, ACTIONS)

    log_prob = jax.block_until_ready(pg_discrete_policy_forward(state, action, params))
    ref = reference_forward(state, action, params)
    np.testing.assert_allclose(np.asarray(log_prob), np.asarray(ref),
                               rtol=1e-4, atol=1e-4)
    print("KERNEL_OK")
</pallas_src>

<mosaic_0001>
module attributes {stable_mosaic.version = 11 : i64} {
  func.func @pg_discrete_policy_kernel(%arg0: i32, %arg1: memref<16x128xbf16, #tpu.memory_space<vmem>>, %arg2: memref<128x16xbf16, #tpu.memory_space<vmem>>, %arg3: memref<128x1xf32, #tpu.memory_space<vmem>>, %arg4: memref<128x128xbf16, #tpu.memory_space<vmem>>, %arg5: memref<128x1xf32, #tpu.memory_space<vmem>>, %arg6: memref<8x128xbf16, #tpu.memory_space<vmem>>, %arg7: memref<8x1xf32, #tpu.memory_space<vmem>>, %arg8: memref<1x128xi32, #tpu.memory_space<vmem>>, %arg9: memref<1x128xf32, #tpu.memory_space<vmem>>) attributes {dimension_semantics = [#tpu.dimension_semantics<parallel>], iteration_bounds = array<i64: 4>, scalar_prefetch = 0 : i64, scratch_operands = 0 : i64, tpu.core_type = #tpu.core_type<tc>, window_params = [{transform_indices = @transform_0, window_bounds = array<i64: 16, 128>}, {pipeline_mode = #tpu.pipeline_mode<synchronous>, transform_indices = @transform_1, window_bounds = array<i64: 128, 16>}, {pipeline_mode = #tpu.pipeline_mode<synchronous>, transform_indices = @transform_2, window_bounds = array<i64: 128, 1>}, {pipeline_mode = #tpu.pipeline_mode<synchronous>, transform_indices = @transform_3, window_bounds = array<i64: 128, 128>}, {pipeline_mode = #tpu.pipeline_mode<synchronous>, transform_indices = @transform_4, window_bounds = array<i64: 128, 1>}, {pipeline_mode = #tpu.pipeline_mode<synchronous>, transform_indices = @transform_5, window_bounds = array<i64: 8, 128>}, {pipeline_mode = #tpu.pipeline_mode<synchronous>, transform_indices = @transform_6, window_bounds = array<i64: 8, 1>}, {transform_indices = @transform_7, window_bounds = array<i64: 1, 128>}, {transform_indices = @transform_8, window_bounds = array<i64: 1, 128>}]} {
    %c0 = arith.constant 0 : index
    %c0_0 = arith.constant 0 : index
    %0 = vector.load %arg1[%c0, %c0_0] : memref<16x128xbf16, #tpu.memory_space<vmem>>, vector<16x128xbf16>
    %c0_1 = arith.constant 0 : index
    %c0_2 = arith.constant 0 : index
    %1 = vector.load %arg2[%c0_1, %c0_2] : memref<128x16xbf16, #tpu.memory_space<vmem>>, vector<128x16xbf16>
    %cst = arith.constant dense<0.000000e+00> : vector<128x128xf32>
    %2 = tpu.matmul %1, %0, %cst {dimension_numbers = #tpu.dot_dimension_numbers<[1], [0], [0], [1], [0, 0, 1, 1], [], []>} : vector<128x16xbf16>, vector<16x128xbf16>, vector<128x128xf32> -> vector<128x128xf32>
    %c0_3 = arith.constant 0 : index
    %c0_4 = arith.constant 0 : index
    %3 = vector.load %arg3[%c0_3, %c0_4] : memref<128x1xf32, #tpu.memory_space<vmem>>, vector<128x1xf32>
    %4 = vector.broadcast %3 : vector<128x1xf32> to vector<128x128xf32>
    %5 = arith.addf %2, %4 : vector<128x128xf32>
    %cst_5 = arith.constant 0.000000e+00 : f32
    %6 = vector.broadcast %cst_5 : f32 to vector<128x128xf32>
    %7 = arith.maximumf %5, %6 : vector<128x128xf32>
    %c0_6 = arith.constant 0 : index
    %c0_7 = arith.constant 0 : index
    %8 = vector.load %arg4[%c0_6, %c0_7] : memref<128x128xbf16, #tpu.memory_space<vmem>>, vector<128x128xbf16>
    %9 = arith.truncf %7 : vector<128x128xf32> to vector<128x128xbf16>
    %cst_8 = arith.constant dense<0.000000e+00> : vector<128x128xf32>
    %10 = tpu.matmul %8, %9, %cst_8 {dimension_numbers = #tpu.dot_dimension_numbers<[1], [0], [0], [1], [0, 0, 1, 1], [], []>} : vector<128x128xbf16>, vector<128x128xbf16>, vector<128x128xf32> -> vector<128x128xf32>
    %c0_9 = arith.constant 0 : index
    %c0_10 = arith.constant 0 : index
    %11 = vector.load %arg5[%c0_9, %c0_10] : memref<128x1xf32, #tpu.memory_space<vmem>>, vector<128x1xf32>
    %12 = vector.broadcast %11 : vector<128x1xf32> to vector<128x128xf32>
    %13 = arith.addf %10, %12 : vector<128x128xf32>
    %cst_11 = arith.constant 0.000000e+00 : f32
    %14 = vector.broadcast %cst_11 : f32 to vector<128x128xf32>
    %15 = arith.maximumf %13, %14 : vector<128x128xf32>
    %c0_12 = arith.constant 0 : index
    %c0_13 = arith.constant 0 : index
    %16 = vector.load %arg6[%c0_12, %c0_13] : memref<8x128xbf16, #tpu.memory_space<vmem>>, vector<8x128xbf16>
    %17 = arith.truncf %15 : vector<128x128xf32> to vector<128x128xbf16>
    %cst_14 = arith.constant dense<0.000000e+00> : vector<8x128xf32>
    %18 = tpu.matmul %16, %17, %cst_14 {dimension_numbers = #tpu.dot_dimension_numbers<[1], [0], [0], [1], [0, 0, 1, 1], [], []>} : vector<8x128xbf16>, vector<128x128xbf16>, vector<8x128xf32> -> vector<8x128xf32>
    %c0_15 = arith.constant 0 : index
    %c0_16 = arith.constant 0 : index
    %19 = vector.load %arg7[%c0_15, %c0_16] : memref<8x1xf32, #tpu.memory_space<vmem>>, vector<8x1xf32>
    %20 = vector.broadcast %19 : vector<8x1xf32> to vector<8x128xf32>
    %21 = arith.addf %18, %20 : vector<8x128xf32>
    %cst_17 = arith.constant dense<0xFF800000> : vector<128xf32>
    %22 = vector.multi_reduction <maximumf>, %21, %cst_17 [0] : vector<8x128xf32> to vector<128xf32>
    %23 = vector.shape_cast %22 : vector<128xf32> to vector<1x128xf32>
    %24 = vector.broadcast %23 : vector<1x128xf32> to vector<8x128xf32>
    %25 = arith.subf %21, %24 : vector<8x128xf32>
    %26 = math.exp %25 : vector<8x128xf32>
    %cst_18 = arith.constant dense<0.000000e+00> : vector<128xf32>
    %27 = vector.multi_reduction <add>, %26, %cst_18 [0] : vector<8x128xf32> to vector<128xf32>
    %28 = vector.shape_cast %27 : vector<128xf32> to vector<1x128xf32>
    %29 = math.log %28 : vector<1x128xf32>
    %30 = vector.broadcast %29 : vector<1x128xf32> to vector<8x128xf32>
    %31 = arith.subf %25, %30 : vector<8x128xf32>
    %32 = tpu.iota {dimensions = array<i32: 0>} : vector<8x128xi32>
    %c0_19 = arith.constant 0 : index
    %c0_20 = arith.constant 0 : index
    %33 = vector.load %arg8[%c0_19, %c0_20] : memref<1x128xi32, #tpu.memory_space<vmem>>, vector<1x128xi32>
    %34 = vector.broadcast %33 : vector<1x128xi32> to vector<8x128xi32>
    %35 = arith.cmpi eq, %32, %34 : vector<8x128xi32>
    %cst_21 = arith.constant 0.000000e+00 : f32
    %36 = vector.broadcast %cst_21 : f32 to vector<8x128xf32>
    %37 = arith.select %35, %31, %36 : vector<8x128xi1>, vector<8x128xf32>
    %cst_22 = arith.constant dense<0.000000e+00> : vector<128xf32>
    %38 = vector.multi_reduction <add>, %37, %cst_22 [0] : vector<8x128xf32> to vector<128xf32>
    %39 = vector.shape_cast %38 : vector<128xf32> to vector<1x128xf32>
    %c0_23 = arith.constant 0 : index
    %c0_24 = arith.constant 0 : index
    %40 = vector.load %arg9[%c0_23, %c0_24] : memref<1x128xf32, #tpu.memory_space<vmem>>, vector<1x128xf32>
    tpu.vector_store %arg9[%c0_23, %c0_24], %39 {strides = array<i32>} : memref<1x128xf32, #tpu.memory_space<vmem>>, vector<1x128xf32>,
    return
  }
  func.func @transform_0(%arg0: i32) -> (i32, i32) {
    %c0_i32 = arith.constant 0 : i32
    %c0_i32_0 = arith.constant 0 : i32
    return %c0_i32, %arg0 : i32, i32
  }
  func.func @transform_1(%arg0: i32) -> (i32, i32) {
    %c0_i32 = arith.constant 0 : i32
    %c0_i32_0 = arith.constant 0 : i32
    %c0_i32_1 = arith.constant 0 : i32
    return %c0_i32, %c0_i32_0 : i32, i32
  }
  func.func @transform_2(%arg0: i32) -> (i32, i32) {
    %c0_i32 = arith.constant 0 : i32
    %c0_i32_0 = arith.constant 0 : i32
    %c0_i32_1 = arith.constant 0 : i32
    return %c0_i32, %c0_i32_0 : i32, i32
  }
  func.func @transform_3(%arg0: i32) -> (i32, i32) {
    %c0_i32 = arith.constant 0 : i32
    %c0_i32_0 = arith.constant 0 : i32
    %c0_i32_1 = arith.constant 0 : i32
    return %c0_i32, %c0_i32_0 : i32, i32
  }
  func.func @transform_4(%arg0: i32) -> (i32, i32) {
    %c0_i32 = arith.constant 0 : i32
    %c0_i32_0 = arith.constant 0 : i32
    %c0_i32_1 = arith.constant 0 : i32
    return %c0_i32, %c0_i32_0 : i32, i32
  }
  func.func @transform_5(%arg0: i32) -> (i32, i32) {
    %c0_i32 = arith.constant 0 : i32
    %c0_i32_0 = arith.constant 0 : i32
    %c0_i32_1 = arith.constant 0 : i32
    return %c0_i32, %c0_i32_0 : i32, i32
  }
  func.func @transform_6(%arg0: i32) -> (i32, i32) {
    %c0_i32 = arith.constant 0 : i32
    %c0_i32_0 = arith.constant 0 : i32
    %c0_i32_1 = arith.constant 0 : i32
    return %c0_i32, %c0_i32_0 : i32, i32
  }
  func.func @transform_7(%arg0: i32) -> (i32, i32) {
    %c0_i32 = arith.constant 0 : i32
    %c0_i32_0 = arith.constant 0 : i32
    return %c0_i32, %arg0 : i32, i32
  }
  func.func @transform_8(%arg0: i32) -> (i32, i32) {
    %c0_i32 = arith.constant 0 : i32
    %c0_i32_0 = arith.constant 0 : i32
    return %c0_i32, %arg0 : i32, i32
  }
}

</mosaic_0001>

<llo_original>
// kernel: tpu_custom_call.1
$region0: #{tpu_custom_call.1}
  #allocation0 [shape = 'u32[]', space=smem, size = 0x4, offset = 0x4, fixed_abs, tag = 'smem constant byte address 0x4 - core index']
  #allocation1 [shape = 'u32[144,128]{1,0:T(1,128)}', space=vmem, size = 0x12000, scoped, tag = 'internal scratch']
  %s0 = inlined_call_operand.vmem [shape: bf16[16,512], index: 0, kind: input, shape index: {}]
  %s1 = inlined_call_operand.vmem [shape: bf16[128,16], index: 1, kind: input, shape index: {}]
  %s2 = inlined_call_operand.vmem [shape: f32[128,1], index: 2, kind: input, shape index: {}]
  %s3 = inlined_call_operand.vmem [shape: bf16[128,128], index: 3, kind: input, shape index: {}]
  %s4 = inlined_call_operand.vmem [shape: f32[128,1], index: 4, kind: input, shape index: {}]
  %s5 = inlined_call_operand.vmem [shape: bf16[8,128], index: 5, kind: input, shape index: {}]
  %s6 = inlined_call_operand.vmem [shape: f32[8,1], index: 6, kind: input, shape index: {}]
  %s7 = inlined_call_operand.vmem [shape: s32[1,512], index: 7, kind: input, shape index: {}]
  %s8 = inlined_call_operand.hbm [shape: f32[1,512], index: 8, kind: output, shape index: {}]
  %s9 = sld [smem:[#allocation0]]
  $region106: #{tpu_custom_call.1} parent=0
    _
  %s11 = ssub.s32 1, %s9
  %s12 = scalar_select 0, %s11, %s9
  $region1: #{tpu_custom_call.1} parent=0
    #allocation2 [shape = 'u8[8192]{0}', space=vmem, size = 0x2000, scoped, tag = 'input window, operand 0']
    #allocation3 [shape = 'u8[1024]{0}', space=vmem, size = 0x400, scoped, tag = 'output window, operand 0']
    #allocation4 [shape = 's32[2]{0}', space=sflag, size = 0x8, scoped, tag = 'scoped memory for tpu_custom_call.1']
    %13 = vsyncpa [#allocation4], 0
    %s14 = scalar_lea.sflag [#allocation4], 1
    %15 = vsyncpa %s14, 0
    loop: start=0, step=1, limit=6
    $region2: #{tpu_custom_call.1} parent=1 // loop_pre_header
      _
    $region3: #{tpu_custom_call.1} parent=1 // loop_header
      %s17 = sphi 0, %s21
      %p18 = scmp.ge.s32.totalorder %s17, 6
      %s27 = sphi 0, %s29
      %s30 = sphi 0, %s27
      %s31 = sphi 0, %s30
      %s47 = sphi 0, %s31
      %s51 = sphi 0, %s51
      %s53 = sphi 0, %s51
      %s54 = sphi 0, %s53
      %s68 = sphi 0, %s54
      %s72 = sphi 0, %s72
      %s74 = sphi 0, %s72
      %s75 = sphi 0, %s74
      %s89 = sphi 0, %s75
      %s93 = sphi 0, %s93
      %s95 = sphi 0, %s93
      %s96 = sphi 0, %s95
      %s110 = sphi 0, %s96
      %s114 = sphi 0, %s114
      %s116 = sphi 0, %s114
      %s117 = sphi 0, %s116
      %s131 = sphi 0, %s117
      %s135 = sphi 0, %s135
      %s137 = sphi 0, %s135
      %s138 = sphi 0, %s137
      %s152 = sphi 0, %s138
      %s156 = sphi 0, %s156
      %s158 = sphi 0, %s156
      %s159 = sphi 0, %s158
      %s173 = sphi 0, %s159
      %s179 = sphi 0, %s181
      %s182 = sphi 0, %s179
      %s183 = sphi 0, %s182
      %s199 = sphi 0, %s183
      %s205 = sphi 0, %s207
      %s208 = sphi 0, %s205
      %s209 = sphi 0, %s208
      %s225 = sphi 0, %s209
    $region4: #{tpu_custom_call.1} parent=1 // loop_header_branch
      %20 = sbr.rel (%p18) target = $region8
    $region5: #{tpu_custom_call.1} parent=1 // loop_body
      %s22 = ssub.s32 %s17, 1
      %s23 = ssub.s32 %s17, 2
      %s24 = sadd.s32 %s17, 1
      %s25 = ssub.s32 %s17, %s24
      %p26 = scmp.eq.s32.totalorder %s25, 0
      %s28 = sadd.s32 %s27, 1
      %s29 = scalar_select %p26, %s27, %s28
      %p32 = pneg %p26
      %p33 = scmp.eq.s32.totalorder %s17, 3
      %p34 = por %p32, %p33
      %p35 = scmp.ne.s32.totalorder %s27, %s30
      %p36 = scmp.eq.s32.totalorder %s17, 0
      %p37 = por %p35, %p36
      %p38 = scmp.ne.s32.totalorder %s27, %s30
      %p39 = scmp.eq.s32.totalorder %s22, 3
      %p40 = por %p38, %p39
      %p41 = scmp.ne.s32.totalorder %s30, %s31
      %p42 = scmp.eq.s32.totalorder %s22, 0
      %p43 = por %p41, %p42
      %p44 = scmp.ne.s32.totalorder %s30, %s31
      %p45 = scmp.eq.s32.totalorder %s23, 3
      %p46 = por %p44, %p45
      %p48 = scmp.ne.s32.totalorder %s31, %s47
      %p49 = scmp.eq.s32.totalorder %s23, 0
      %p50 = por %p48, %p49
      %s52 = sadd.s32 %s51, 1
      %p55 = scmp.eq.s32.totalorder %s17, 3
      %p56 = scmp.ne.s32.totalorder %s51, %s53
      %p57 = scmp.eq.s32.totalorder %s17, 0
      %p58 = por %p56, %p57
      %p59 = scmp.ne.s32.totalorder %s51, %s53
      %p60 = scmp.eq.s32.totalorder %s22, 3
      %p61 = por %p59, %p60
      %p62 = scmp.ne.s32.totalorder %s53, %s54
      %p63 = scmp.eq.s32.totalorder %s22, 0
      %p64 = por %p62, %p63
      %p65 = scmp.ne.s32.totalorder %s53, %s54
      %p66 = scmp.eq.s32.totalorder %s23, 3
      %p67 = por %p65, %p66
      %p69 = scmp.ne.s32.totalorder %s54, %s68
      %p70 = scmp.eq.s32.totalorder %s23, 0
      %p71 = por %p69, %p70
      %s73 = sadd.s32 %s72, 1
      %p76 = scmp.eq.s32.totalorder %s17, 3
      %p77 = scmp.ne.s32.totalorder %s72, %s74
      %p78 = scmp.eq.s32.totalorder %s17, 0
      %p79 = por %p77, %p78
      %p80 = scmp.ne.s32.totalorder %s72, %s74
      %p81 = scmp.eq.s32.totalorder %s22, 3
      %p82 = por %p80, %p81
      %p83 = scmp.ne.s32.totalorder %s74, %s75
      %p84 = scmp.eq.s32.totalorder %s22, 0
      %p85 = por %p83, %p84
      %p86 = scmp.ne.s32.totalorder %s74, %s75
      %p87 = scmp.eq.s32.totalorder %s23, 3
      %p88 = por %p86, %p87
      %p90 = scmp.ne.s32.totalorder %s75, %s89
      %p91 = scmp.eq.s32.totalorder %s23, 0
      %p92 = por %p90, %p91
      %s94 = sadd.s32 %s93, 1
      %p97 = scmp.eq.s32.totalorder %s17, 3
      %p98 = scmp.ne.s32.totalorder %s93, %s95
      %p99 = scmp.eq.s32.totalorder %s17, 0
      %p100 = por %p98, %p99
      %p101 = scmp.ne.s32.totalorder %s93, %s95
      %p102 = scmp.eq.s32.totalorder %s22, 3
      %p103 = por %p101, %p102
      %p104 = scmp.ne.s32.totalorder %s95, %s96
      %p105 = scmp.eq.s32.totalorder %s22, 0
      %p106 = por %p104, %p105
      %p107 = scmp.ne.s32.totalorder %s95, %s96
      %p108 = scmp.eq.s32.totalorder %s23, 3
      %p109 = por %p107, %p108
      %p111 = scmp.ne.s32.totalorder %s96, %s110
      %p112 = scmp.eq.s32.totalorder %s23, 0
      %p113 = por %p111, %p112
      %s115 = sadd.s32 %s114, 1
      %p118 = scmp.eq.s32.totalorder %s17, 3
      %p119 = scmp.ne.s32.totalorder %s114, %s116
      %p120 = scmp.eq.s32.totalorder %s17, 0
      %p121 = por %p119, %p120
      %p122 = scmp.ne.s32.totalorder %s114, %s116
      %p123 = scmp.eq.s32.totalorder %s22, 3
      %p124 = por %p122, %p123
      %p125 = scmp.ne.s32.totalorder %s116, %s117
      %p126 = scmp.eq.s32.totalorder %s22, 0
      %p127 = por %p125, %p126
      %p128 = scmp.ne.s32.totalorder %s116, %s117
      %p129 = scmp.eq.s32.totalorder %s23, 3
      %p130 = por %p128, %p129
      %p132 = scmp.ne.s32.totalorder %s117, %s131
      %p133 = scmp.eq.s32.totalorder %s23, 0
      %p134 = por %p132, %p133
      %s136 = sadd.s32 %s135, 1
      %p139 = scmp.eq.s32.totalorder %s17, 3
      %p140 = scmp.ne.s32.totalorder %s135, %s137
      %p141 = scmp.eq.s32.totalorder %s17, 0
      %p142 = por %p140, %p141
      %p143 = scmp.ne.s32.totalorder %s135, %s137
      %p144 = scmp.eq.s32.totalorder %s22, 3
      %p145 = por %p143, %p144
      %p146 = scmp.ne.s32.totalorder %s137, %s138
      %p147 = scmp.eq.s32.totalorder %s22, 0
      %p148 = por %p146, %p147
      %p149 = scmp.ne.s32.totalorder %s137, %s138
      %p150 = scmp.eq.s32.totalorder %s23, 3
      %p151 = por %p149, %p150
      %p153 = scmp.ne.s32.totalorder %s138, %s152
      %p154 = scmp.eq.s32.totalorder %s23, 0
      %p155 = por %p153, %p154
      %s157 = sadd.s32 %s156, 1
      %p160 = scmp.eq.s32.totalorder %s17, 3
      %p161 = scmp.ne.s32.totalorder %s156, %s158
      %p162 = scmp.eq.s32.totalorder %s17, 0
      %p163 = por %p161, %p162
      %p164 = scmp.ne.s32.totalorder %s156, %s158
      %p165 = scmp.eq.s32.totalorder %s22, 3
      %p166 = por %p164, %p165
      %p167 = scmp.ne.s32.totalorder %s158, %s159
      %p168 = scmp.eq.s32.totalorder %s22, 0
      %p169 = por %p167, %p168
      %p170 = scmp.ne.s32.totalorder %s158, %s159
      %p171 = scmp.eq.s32.totalorder %s23, 3
      %p172 = por %p170, %p171
      %p174 = scmp.ne.s32.totalorder %s159, %s173
      %p175 = scmp.eq.s32.totalorder %s23, 0
      %p176 = por %p174, %p175
      %s177 = ssub.s32 %s17, %s24
      %p178 = scmp.eq.s32.totalorder %s177, 0
      %s180 = sadd.s32 %s179, 1
      %s181 = scalar_select %p178, %s179, %s180
      %p184 = pneg %p178
      %p185 = scmp.eq.s32.totalorder %s17, 3
      %p186 = por %p184, %p185
      %p187 = scmp.ne.s32.totalorder %s179, %s182
      %p188 = scmp.eq.s32.totalorder %s17, 0
      %p189 = por %p187, %p188
      %p190 = scmp.ne.s32.totalorder %s179, %s182
      %p191 = scmp.eq.s32.totalorder %s22, 3
      %p192 = por %p190, %p191
      %p193 = scmp.ne.s32.totalorder %s182, %s183
      %p194 = scmp.eq.s32.totalorder %s22, 0
      %p195 = por %p193, %p194
      %p196 = scmp.ne.s32.totalorder %s182, %s183
      %p197 = scmp.eq.s32.totalorder %s23, 3
      %p198 = por %p196, %p197
      %p200 = scmp.ne.s32.totalorder %s183, %s199
      %p201 = scmp.eq.s32.totalorder %s23, 0
      %p202 = por %p200, %p201
      %s203 = ssub.s32 %s17, %s24
      %p204 = scmp.eq.s32.totalorder %s203, 0
      %s206 = sadd.s32 %s205, 1
      %s207 = scalar_select %p204, %s205, %s206
      %p210 = pneg %p204
      %p211 = scmp.eq.s32.totalorder %s17, 3
      %p212 = por %p210, %p211
      %p213 = scmp.ne.s32.totalorder %s205, %s208
      %p214 = scmp.eq.s32.totalorder %s17, 0
      %p215 = por %p213, %p214
      %p216 = scmp.ne.s32.totalorder %s205, %s208
      %p217 = scmp.eq.s32.totalorder %s22, 3
      %p218 = por %p216, %p217
      %p219 = scmp.ne.s32.totalorder %s208, %s209
      %p220 = scmp.eq.s32.totalorder %s22, 0
      %p221 = por %p219, %p220
      %p222 = scmp.ne.s32.totalorder %s208, %s209
      %p223 = scmp.eq.s32.totalorder %s23, 3
      %p224 = por %p222, %p223
      %p226 = scmp.ne.s32.totalorder %s209, %s225
      %p227 = scmp.eq.s32.totalorder %s23, 0
      %p228 = por %p226, %p227
      %p229 = scmp.le.s32.totalorder 1, %s17
      %p230 = scmp.lt.s32.totalorder %s17, 5
      %p231 = pnand %p229, %p230
      %p232 = pneg %p231
      // Predicated region
      $region9: #{tpu_custom_call.1} parent=5 // pred_check
        _
      $region10: #{tpu_custom_call.1} parent=5 // pred_check_branch
        %234 = sbr.rel (%p231) target = $region12
      $region11: #{tpu_custom_call.1} parent=5 // pred_region
        %s235 = ssub.s32 %s17, 1
        // Predicated region
        $region13: #{tpu_custom_call.1} parent=11 // pred_check
          %p236 = pneg %p64
        $region14: #{tpu_custom_call.1} parent=11 // pred_check_branch
          %238 = sbr.rel (%p236) target = $region16
        $region15: #{tpu_custom_call.1} parent=11 // pred_region
          _
        $region16: #{tpu_custom_call.1} parent=11 // pred_fallthru
          _
        // Predicated region
        $region17: #{tpu_custom_call.1} parent=11 // pred_check
          %p239 = pneg %p85
        $region18: #{tpu_custom_call.1} parent=11 // pred_check_branch
          %241 = sbr.rel (%p239) target = $region20
        $region19: #{tpu_custom_call.1} parent=11 // pred_region
          _
        $region20: #{tpu_custom_call.1} parent=11 // pred_fallthru
          _
        // Predicated region
        $region21: #{tpu_custom_call.1} parent=11 // pred_check
          %p242 = pneg %p106
        $region22: #{tpu_custom_call.1} parent=11 // pred_check_branch
          %244 = sbr.rel (%p242) target = $region24
        $region23: #{tpu_custom_call.1} parent=11 // pred_region
          _
        $region24: #{tpu_custom_call.1} parent=11 // pred_fallthru
          _
        // Predicated region
        $region25: #{tpu_custom_call.1} parent=11 // pred_check
          %p245 = pneg %p127
        $region26: #{tpu_custom_call.1} parent=11 // pred_check_branch
          %247 = sbr.rel (%p245) target = $region28
        $region27: #{tpu_custom_call.1} parent=11 // pred_region
          _
        $region28: #{tpu_custom_call.1} parent=11 // pred_fallthru
          _
        // Predicated region
        $region29: #{tpu_custom_call.1} parent=11 // pred_check
          %p248 = pneg %p148
        $region30: #{tpu_custom_call.1} parent=11 // pred_check_branch
          %250 = sbr.rel (%p248) target = $region32
        $region31: #{tpu_custom_call.1} parent=11 // pred_region
          _
        $region32: #{tpu_custom_call.1} parent=11 // pred_fallthru
          _
        // Predicated region
        $region33: #{tpu_custom_call.1} parent=11 // pred_check
          %p251 = pneg %p169
        $region34: #{tpu_custom_call.1} parent=11 // pred_check_branch
          %253 = sbr.rel (%p251) target = $region36
        $region35: #{tpu_custom_call.1} parent=11 // pred_region
          _
        $region36: #{tpu_custom_call.1} parent=11 // pred_fallthru
          _
      $region12: #{tpu_custom_call.1} parent=5 // pred_fallthru
        _
      %p254 = scmp.lt.s32.totalorder %s17, 4
      // Predicated region
      $region37: #{tpu_custom_call.1} parent=5 // pred_check
        %p255 = pneg %p254
      $region38: #{tpu_custom_call.1} parent=5 // pred_check_branch
        %257 = sbr.rel (%p255) target = $region40
      $region39: #{tpu_custom_call.1} parent=5 // pred_region
        // Predicated region
        $region41: #{tpu_custom_call.1} parent=39 // pred_check
          %p258 = pneg %p37
        $region42: #{tpu_custom_call.1} parent=39 // pred_check_branch
          %260 = sbr.rel (%p258) target = $region44
        $region43: #{tpu_custom_call.1} parent=39 // pred_region
          %s261 = sand.u32 %s27, 1
          %s262 = sand.u32 %s27, 1
          %s263 = smul.addr %s262, 8
          %s264 = scalar_lea.vmem [#allocation2], %s263
          %s265 = smul.addr %s17, 4
          %s266 = scalar_lea.vmem %s0, %s265
          // Predicated region
          $region45: #{tpu_custom_call.1} parent=43 // pred_check
            _
          $region46: #{tpu_custom_call.1} parent=43 // pred_check_branch
            %268 = sbr.rel (0) target = $region48
          $region47: #{tpu_custom_call.1} parent=43 // pred_region
            // Predicated region
            $region49: #{tpu_custom_call.1} parent=47 // pred_check
              _
            $region50: #{tpu_custom_call.1} parent=47 // pred_check_branch
              %270 = sbr.rel target = $region52
            $region51: #{tpu_custom_call.1} parent=47 // pred_region
              // Predicated region
              $region64: #{tpu_custom_call.1} parent=51 // pred_check
                _
              $region65: #{tpu_custom_call.1} parent=51 // pred_check_branch
                %287 = sbr.rel (0) target = $region67
              $region66: #{tpu_custom_call.1} parent=51 // pred_region
                loop: start=0, step=1, limit=1
                $region68: #{tpu_custom_call.1} parent=66 // loop_pre_header
                  _
                $region69: #{tpu_custom_call.1} parent=66 // loop_header
                  %s289 = sphi 0, %s293
                  %p290 = scmp.ge.s32.totalorder %s289, 1
                  %s294 = sphi %s266, %s266
                  %s295 = sphi %s264, %s264
                $region70: #{tpu_custom_call.1} parent=66 // loop_header_branch
                  %292 = sbr.rel (%p290) target = $region74
                $region71: #{tpu_custom_call.1} parent=66 // loop_body
                  _
                $region72: #{tpu_custom_call.1} parent=66 // loop_footer
                  %s293 = sadd.s32 1, %s289
                $region73: #{tpu_custom_call.1} parent=66 // loop_footer_branch
                  %288 = sbr.rel target = $region69
                $region74: #{tpu_custom_call.1} parent=66 // loop_exit
                  _
                loop: start=0, step=1, limit=1
                $region75: #{tpu_custom_call.1} parent=66 // loop_pre_header
                  _
                $region76: #{tpu_custom_call.1} parent=66 // loop_header
                  %s298 = sphi 0, %s302
                  %p299 = scmp.ge.s32.totalorder %s298, 1
                  %s303 = sphi %s266, %s266
                  %s304 = sphi %s264, %s264
                $region77: #{tpu_custom_call.1} parent=66 // loop_header_branch
                  %301 = sbr.rel (%p299) target = $region81
                $region78: #{tpu_custom_call.1} parent=66 // loop_body
                  %v305 = vld [vmem:[%s303] sm:$0xf]
                  %306 = vst [vmem:[%s304] sm:$0xf] %v305
                  %v307 = vld [vmem:[%s303 + $0x10] sm:$0xf]
                  %308 = vst [vmem:[%s304 + $0x4] sm:$0xf] %v307
                $region79: #{tpu_custom_call.1} parent=66 // loop_footer
                  %s302 = sadd.s32 1, %s298
                $region80: #{tpu_custom_call.1} parent=66 // loop_footer_branch
                  %297 = sbr.rel target = $region76
                $region81: #{tpu_custom_call.1} parent=66 // loop_exit
                  _
              $region67: #{tpu_custom_call.1} parent=51 // pred_fallthru
                _
            $region52: #{tpu_custom_call.1} parent=47 // pred_fallthru
              _
            // Predicated region
            $region53: #{tpu_custom_call.1} parent=47 // pred_check
              _
            $region54: #{tpu_custom_call.1} parent=47 // pred_check_branch
              %272 = sbr.rel (0) target = $region56
            $region55: #{tpu_custom_call.1} parent=47 // pred_region
              loop: start=0, step=1, limit=1
              $region57: #{tpu_custom_call.1} parent=55 // loop_pre_header
                _
              $region58: #{tpu_custom_call.1} parent=55 // loop_header
                %s275 = sphi 0, %s279
                %p276 = scmp.ge.s32.totalorder %s275, 1
                %s280 = sphi %s266, %s266
                %s281 = sphi %s264, %s264
              $region59: #{tpu_custom_call.1} parent=55 // loop_header_branch
                %278 = sbr.rel (%p276) target = $region63
              $region60: #{tpu_custom_call.1} parent=55 // loop_body
                %v282 = vld [vmem:[%s280] sm:$0xf]
                %283 = vst [vmem:[%s281] sm:$0xf] %v282
                %v284 = vld [vmem:[%s280 + $0x10] sm:$0xf]
                %285 = vst [vmem:[%s281 + $0x4] sm:$0xf] %v284
              $region61: #{tpu_custom_call.1} parent=55 // loop_footer
                %s279 = sadd.s32 1, %s275
              $region62: #{tpu_custom_call.1} parent=55 // loop_footer_branch
                %274 = sbr.rel target = $region58
              $region63: #{tpu_custom_call.1} parent=55 // loop_exit
                _
            $region56: #{tpu_custom_call.1} parent=47 // pred_fallthru
              _
          $region48: #{tpu_custom_call.1} parent=43 // pred_fallthru
            _
          %309 = vnop
        $region44: #{tpu_custom_call.1} parent=39 // pred_fallthru
          _
        // Predicated region
        $region82: #{tpu_custom_call.1} parent=39 // pred_check
          %p310 = pneg %p189
        $region83: #{tpu_custom_call.1} parent=39 // pred_check_branch
          %312 = sbr.rel (%p310) target = $region85
        $region84: #{tpu_custom_call.1} parent=39 // pred_region
          %p313 = scmp.lt.s32.totalorder %s17, 3
          %s314 = scalar_select %p313, %s17, 3
          %s315 = scalar_lea.vmem %s7, %s314
        $region85: #{tpu_custom_call.1} parent=39 // pred_fallthru
          _
      $region40: #{tpu_custom_call.1} parent=5 // pred_fallthru
        _
      %p316 = scmp.le.s32.totalorder 1, %s17
      %p317 = scmp.lt.s32.totalorder %s17, 5
      %p318 = pnand %p316, %p317
      %p319 = pneg %p318
      // Predicated region
      $region86: #{tpu_custom_call.1} parent=5 // pred_check
        _
      $region87: #{tpu_custom_call.1} parent=5 // pred_check_branch
        %321 = sbr.rel (%p318) target = $region89
      $region88: #{tpu_custom_call.1} parent=5 // pred_region
        %s322 = ssub.s32 %s17, 1
        %s323 = sand.u32 %s30, 1
        %s324 = sand.u32 %s30, 1
        %s325 = smul.addr %s324, 8
        %s326 = scalar_lea.vmem [#allocation2], %s325
        // Predicated region
        $region90: #{tpu_custom_call.1} parent=88 // pred_check
          %p327 = pneg %p43
        $region91: #{tpu_custom_call.1} parent=88 // pred_check_branch
          %329 = sbr.rel (%p327) target = $region93
        $region92: #{tpu_custom_call.1} parent=88 // pred_region
          _
        $region93: #{tpu_custom_call.1} parent=88 // pred_fallthru
          _
        %s330 = sand.u32 %s30, 1
        %s331 = sand.u32 %s30, 1
        %s332 = smul.addr %s331, 8
        %s333 = scalar_lea.vmem [#allocation2], %s332
        %p334 = pneg %p43
        %p335 = pneg %p40
        %p336 = pneg %p64
        %p337 = pneg %p61
        %p338 = pneg %p85
        %p339 = pneg %p82
        %p340 = pneg %p106
        %p341 = pneg %p103
        %p342 = pneg %p127
        %p343 = pneg %p124
        %p344 = pneg %p148
        %p345 = pneg %p145
        %p346 = pneg %p169
        %p347 = pneg %p166
        %p348 = scmp.lt.s32.totalorder %s22, 3
        %s349 = scalar_select %p348, %s22, 3
        %s350 = scalar_lea.vmem %s7, %s349
        %p351 = pneg %p195
        %p352 = pneg %p192
        %p353 = pneg %p221
        %p354 = pneg %p218
        %s355 = sand.u32 %s208, 1
        %s356 = scalar_lea.sflag [#allocation4], %s355
        %s357 = sand.u32 %s208, 1
        %s358 = scalar_lea.vmem [#allocation3], %s357
        %p359 = scmp.lt.s32.totalorder %s22, 3
        %s360 = scalar_select %p359, %s22, 3
        %s361 = scalar_lea.vmem %s7, %s360
        %v363 = vld [vmem:[%s326] sm:$0xf]
        %v364 = vld [vmem:[%s326 + $0x4] sm:$0xf]
        %v365 = vld [vmem:[%s1] sm:$0xf]
        %v366 = vld [vmem:[%s1 + $0x4] sm:$0xf]
        %v367 = vld [vmem:[%s1 + $0x8] sm:$0xf]
        %v368 = vld [vmem:[%s1 + $0xc] sm:$0xf]
        %v369 = vld [vmem:[%s1 + $0x10] sm:$0xf]
        %v370 = vld [vmem:[%s1 + $0x14] sm:$0xf]
        %v371 = vld [vmem:[%s1 + $0x18] sm:$0xf]
        %v372 = vld [vmem:[%s1 + $0x1c] sm:$0xf]
        %v373 = vld [vmem:[%s1 + $0x20] sm:$0xf]
        %v374 = vld [vmem:[%s1 + $0x24] sm:$0xf]
        %v375 = vld [vmem:[%s1 + $0x28] sm:$0xf]
        %v376 = vld [vmem:[%s1 + $0x2c] sm:$0xf]
        %v377 = vld [vmem:[%s1 + $0x30] sm:$0xf]
        %v378 = vld [vmem:[%s1 + $0x34] sm:$0xf]
        %v379 = vld [vmem:[%s1 + $0x38] sm:$0xf]
        %v380 = vld [vmem:[%s1 + $0x3c] sm:$0xf]
        %v381 = vld [vmem:[%s2] sm:$0xff]
        %v382 = vld [vmem:[%s2 + $0x8] sm:$0xff]
        %v383 = vld [vmem:[%s2 + $0x10] sm:$0xff]
        %v384 = vld [vmem:[%s2 + $0x18] sm:$0xff]
        %v385 = vld [vmem:[%s2 + $0x20] sm:$0xff]
        %v386 = vld [vmem:[%s2 + $0x28] sm:$0xff]
        %v387 = vld [vmem:[%s2 + $0x30] sm:$0xff]
        %v388 = vld [vmem:[%s2 + $0x38] sm:$0xff]
        %v389 = vld [vmem:[%s2 + $0x40] sm:$0xff]
        %v390 = vld [vmem:[%s2 + $0x48] sm:$0xff]
        %v391 = vld [vmem:[%s2 + $0x50] sm:$0xff]
        %v392 = vld [vmem:[%s2 + $0x58] sm:$0xff]
        %v393 = vld [vmem:[%s2 + $0x60] sm:$0xff]
        %v394 = vld [vmem:[%s2 + $0x68] sm:$0xff]
        %v395 = vld [vmem:[%s2 + $0x70] sm:$0xff]
        %v396 = vld [vmem:[%s2 + $0x78] sm:$0xff]
        %398 = vset.pattern.permute.xlu0 0
        %399 = vperm.xlu0 %398, %v381
        %v400 = vpop.permute.xlu0 %399
        %403 = vset.pattern.permute.xlu0 0
        %404 = vperm.xlu0 %403, %v382
        %v405 = vpop.permute.xlu0 %404
        %408 = vset.pattern.permute.xlu0 0
        %409 = vperm.xlu0 %408, %v383
        %v410 = vpop.permute.xlu0 %409
        %413 = vset.pattern.permute.xlu0 0
        %414 = vperm.xlu0 %413, %v384
        %v415 = vpop.permute.xlu0 %414
        %418 = vset.pattern.permute.xlu0 0
        %419 = vperm.xlu0 %418, %v385
        %v420 = vpop.permute.xlu0 %419
        %423 = vset.pattern.permute.xlu0 0
        %424 = vperm.xlu0 %423, %v386
        %v425 = vpop.permute.xlu0 %424
        %428 = vset.pattern.permute.xlu0 0
        %429 = vperm.xlu0 %428, %v387
        %v430 = vpop.permute.xlu0 %429
        %433 = vset.pattern.permute.xlu0 0
        %434 = vperm.xlu0 %433, %v388
        %v435 = vpop.permute.xlu0 %434
        %438 = vset.pattern.permute.xlu0 0
        %439 = vperm.xlu0 %438, %v389
        %v440 = vpop.permute.xlu0 %439
        %443 = vset.pattern.permute.xlu0 0
        %444 = vperm.xlu0 %443, %v390
        %v445 = vpop.permute.xlu0 %444
        %448 = vset.pattern.permute.xlu0 0
        %449 = vperm.xlu0 %448, %v391
        %v450 = vpop.permute.xlu0 %449
        %453 = vset.pattern.permute.xlu0 0
        %454 = vperm.xlu0 %453, %v392
        %v455 = vpop.permute.xlu0 %454
        %458 = vset.pattern.permute.xlu0 0
        %459 = vperm.xlu0 %458, %v393
        %v460 = vpop.permute.xlu0 %459
        %463 = vset.pattern.permute.xlu0 0
        %464 = vperm.xlu0 %463, %v394
        %v465 = vpop.permute.xlu0 %464
        %468 = vset.pattern.permute.xlu0 0
        %469 = vperm.xlu0 %468, %v395
        %v470 = vpop.permute.xlu0 %469
        %473 = vset.pattern.permute.xlu0 0
        %474 = vperm.xlu0 %473, %v396
        %v475 = vpop.permute.xlu0 %474
        %v493 = vunpack.c.l.b16 %v365
        %v494 = vunpack.c.l.b16 %v366
        %v495 = vunpack.c.l.b16 %v367
        %v496 = vunpack.c.l.b16 %v368
        %v497 = vunpack.c.l.b16 %v369
        %v498 = vunpack.c.l.b16 %v370
        %v499 = vunpack.c.l.b16 %v371
        %v500 = vunpack.c.l.b16 %v372
        %v501 = vunpack.c.l.b16 %v373
        %v502 = vunpack.c.l.b16 %v374
        %v503 = vunpack.c.l.b16 %v375
        %v504 = vunpack.c.l.b16 %v376
        %v505 = vunpack.c.l.b16 %v377
        %v506 = vunpack.c.l.b16 %v378
        %v507 = vunpack.c.l.b16 %v379
        %v508 = vunpack.c.l.b16 %v380
        %v509 = vpack.c.b16 %v494, %v493
        %v510 = vpack.c.b16 %v496, %v495
        %v511 = vpack.c.b16 %v498, %v497
        %v512 = vpack.c.b16 %v500, %v499
        %v513 = vpack.c.b16 %v502, %v501
        %v514 = vpack.c.b16 %v504, %v503
        %v515 = vpack.c.b16 %v506, %v505
        %v516 = vpack.c.b16 %v508, %v507
        %v519 = vunpack.c.l.b16 %v363
        %v520 = vunpack.c.l.b16 %v364
        %v521 = vpack.c.b16 %v520, %v519
        %vm523 = vcmask 130048
        %v525 = vsel %vm523, %v509, 0
        %v528 = vsel %vm523, %v510, 0
        %v531 = vsel %vm523, %v511, 0
        %v534 = vsel %vm523, %v512, 0
        %v537 = vsel %vm523, %v513, 0
        %v540 = vsel %vm523, %v514, 0
        %v543 = vsel %vm523, %v515, 0
        %v546 = vsel %vm523, %v516, 0
        %548 = vmatprep.subr.bf16.mxu0 0
        %549 = vmatpush1.bf16.msra.mxu0 %v521
        %550 = vmatprep.subr.bf16.mxu0 0
        %551 = vmatpush1.bf16.msra.mxu0 0
        %552 = vmatprep.subr.bf16.mxu0 0
        %553 = vmatpush1.bf16.msra.mxu0 0
        %554 = vmatprep.subr.bf16.mxu0 0
        %555 = vmatpush1.bf16.msra.mxu0 0
        %556 = vmatprep.subr.bf16.mxu0 0
        %557 = vmatpush1.bf16.msra.mxu0 0
        %558 = vmatprep.subr.bf16.mxu0 0
        %559 = vmatpush1.bf16.msra.mxu0 0
        %560 = vmatprep.subr.bf16.mxu0 0
        %561 = vmatpush1.bf16.msra.mxu0 0
        %562 = vmatprep.subr.bf16.mxu0 0
        %563 = vmatpush1.bf16.msra.mxu0 0
        %564 = vmatprep.subr.bf16.mxu0 0
        %565 = vmatpush1.bf16.msra.mxu0 0
        %566 = vmatprep.subr.bf16.mxu0 0
        %567 = vmatpush1.bf16.msra.mxu0 0
        %568 = vmatprep.subr.bf16.mxu0 0
        %569 = vmatpush1.bf16.msra.mxu0 0
        %570 = vmatprep.subr.bf16.mxu0 0
        %571 = vmatpush1.bf16.msra.mxu0 0
        %572 = vmatprep.subr.bf16.mxu0 0
        %573 = vmatpush1.bf16.msra.mxu0 0
        %574 = vmatprep.subr.bf16.mxu0 0
        %575 = vmatpush1.bf16.msra.mxu0 0
        %576 = vmatprep.subr.bf16.mxu0 0
        %577 = vmatpush1.bf16.msra.mxu0 0
        %578 = vmatprep.subr.bf16.mxu0 0
        %579 = vmatpush1.bf16.msra.mxu0 0
        %580 = vmatprep.mubr.bf16.mxu0 0
        %581 = vmatmul.mubr.bf16.gmra.mrb[0].mxu0 %v525
        %v582 = vpop.f32.mrb[0].mxu0
        %v583 = vadd.f32 %v400, %v582
        %v584 = vpop.f32.mrb[0].mxu0
        %v585 = vpop.f32.mrb[0].mxu0
        %v586 = vadd.f32 %v405, %v585
        %v587 = vpop.f32.mrb[0].mxu0
        %588 = vmatprep.mubr.bf16.mxu0 0
        %589 = vmatmul.mubr.bf16.gmra.mrb[0].mxu0 %v528
        %v590 = vpop.f32.mrb[0].mxu0
        %v591 = vadd.f32 %v410, %v590
        %v592 = vpop.f32.mrb[0].mxu0
        %v593 = vpop.f32.mrb[0].mxu0
        %v594 = vadd.f32 %v415, %v593
        %v595 = vpop.f32.mrb[0].mxu0
        %596 = vmatprep.mubr.bf16.mxu0 0
        %597 = vmatmul.mubr.bf16.gmra.mrb[0].mxu0 %v531
        %v598 = vpop.f32.mrb[0].mxu0
        %v599 = vadd.f32 %v420, %v598
        %v600 = vpop.f32.mrb[0].mxu0
        %v601 = vpop.f32.mrb[0].mxu0
        %v602 = vadd.f32 %v425, %v601
        %v603 = vpop.f32.mrb[0].mxu0
        %604 = vmatprep.mubr.bf16.mxu0 0
        %605 = vmatmul.mubr.bf16.gmra.mrb[0].mxu0 %v534
        %v606 = vpop.f32.mrb[0].mxu0
        %v607 = vadd.f32 %v430, %v606
        %v608 = vpop.f32.mrb[0].mxu0
        %v609 = vpop.f32.mrb[0].mxu0
        %v610 = vadd.f32 %v435, %v609
        %v611 = vpop.f32.mrb[0].mxu0
        %612 = vmatprep.mubr.bf16.mxu0 0
        %613 = vmatmul.mubr.bf16.gmra.mrb[0].mxu0 %v537
        %v614 = vpop.f32.mrb[0].mxu0
        %v615 = vadd.f32 %v440, %v614
        %v616 = vpop.f32.mrb[0].mxu0
        %v617 = vpop.f32.mrb[0].mxu0
        %v618 = vadd.f32 %v445, %v617
        %v619 = vpop.f32.mrb[0].mxu0
        %620 = vmatprep.mubr.bf16.mxu0 0
        %621 = vmatmul.mubr.bf16.gmra.mrb[0].mxu0 %v540
        %v622 = vpop.f32.mrb[0].mxu0
        %v623 = vadd.f32 %v450, %v622
        %v624 = vpop.f32.mrb[0].mxu0
        %v625 = vpop.f32.mrb[0].mxu0
        %v626 = vadd.f32 %v455, %v625
        %v627 = vpop.f32.mrb[0].mxu0
        %628 = vmatprep.mubr.bf16.mxu0 0
        %629 = vmatmul.mubr.bf16.gmra.mrb[0].mxu0 %v543
        %v630 = vpop.f32.mrb[0].mxu0
        %v631 = vadd.f32 %v460, %v630
        %v632 = vpop.f32.mrb[0].mxu0
        %v633 = vpop.f32.mrb[0].mxu0
        %v634 = vadd.f32 %v465, %v633
        %v635 = vpop.f32.mrb[0].mxu0
        %636 = vmatprep.mubr.bf16.mxu0 0
        %637 = vmatmul.mubr.bf16.gmra.mrb[0].mxu0 %v546
        %v638 = vpop.f32.mrb[0].mxu0
        %v639 = vadd.f32 %v470, %v638
        %v640 = vpop.f32.mrb[0].mxu0
        %v641 = vpop.f32.mrb[0].mxu0
        %v642 = vadd.f32 %v475, %v641
        %v643 = vpop.f32.mrb[0].mxu0
        %644 = vdwg.mxu0
        %v645 = vmax.f32 %v583, 0.0
        %v646 = vmax.f32 %v586, 0.0
        %v647 = vmax.f32 %v591, 0.0
        %v648 = vmax.f32 %v594, 0.0
        %v649 = vmax.f32 %v599, 0.0
        %v650 = vmax.f32 %v602, 0.0
        %v651 = vmax.f32 %v607, 0.0
        %v652 = vmax.f32 %v610, 0.0
        %v653 = vmax.f32 %v615, 0.0
        %v654 = vmax.f32 %v618, 0.0
        %v655 = vmax.f32 %v623, 0.0
        %v656 = vmax.f32 %v626, 0.0
        %v657 = vmax.f32 %v631, 0.0
        %v658 = vmax.f32 %v634, 0.0
        %v659 = vmax.f32 %v639, 0.0
        %v660 = vmax.f32 %v642, 0.0
        %v661 = vld [vmem:[%s3] sm:$0xf]
        %v662 = vld [vmem:[%s3 + $0x4] sm:$0xf]
        %v663 = vld [vmem:[%s3 + $0x8] sm:$0xf]
        %v664 = vld [vmem:[%s3 + $0xc] sm:$0xf]
        %v665 = vld [vmem:[%s3 + $0x10] sm:$0xf]
        %v666 = vld [vmem:[%s3 + $0x14] sm:$0xf]
        %v667 = vld [vmem:[%s3 + $0x18] sm:$0xf]
        %v668 = vld [vmem:[%s3 + $0x1c] sm:$0xf]
        %v669 = vld [vmem:[%s3 + $0x20] sm:$0xf]
        %v670 = vld [vmem:[%s3 + $0x24] sm:$0xf]
        %v671 = vld [vmem:[%s3 + $0x28] sm:$0xf]
        %v672 = vld [vmem:[%s3 + $0x2c] sm:$0xf]
        %v673 = vld [vmem:[%s3 + $0x30] sm:$0xf]
        %v674 = vld [vmem:[%s3 + $0x34] sm:$0xf]
        %v675 = vld [vmem:[%s3 + $0x38] sm:$0xf]
        %v676 = vld [vmem:[%s3 + $0x3c] sm:$0xf]
        %v677 = vpack.c.bf16 %v646, %v645
        %v678 = vpack.c.bf16 %v648, %v647
        %v679 = vpack.c.bf16 %v650, %v649
        %v680 = vpack.c.bf16 %v652, %v651
        %v681 = vpack.c.bf16 %v654, %v653
        %v682 = vpack.c.bf16 %v656, %v655
        %v683 = vpack.c.bf16 %v658, %v657
        %v684 = vpack.c.bf16 %v660, %v659
        %v685 = vld [vmem:[%s4] sm:$0xff]
        %v686 = vld [vmem:[%s4 + $0x8] sm:$0xff]
        %v687 = vld [vmem:[%s4 + $0x10] sm:$0xff]
        %v688 = vld [vmem:[%s4 + $0x18] sm:$0xff]
        %v689 = vld [vmem:[%s4 + $0x20] sm:$0xff]
        %v690 = vld [vmem:[%s4 + $0x28] sm:$0xff]
        %v691 = vld [vmem:[%s4 + $0x30] sm:$0xff]
        %v692 = vld [vmem:[%s4 + $0x38] sm:$0xff]
        %v693 = vld [vmem:[%s4 + $0x40] sm:$0xff]
        %v694 = vld [vmem:[%s4 + $0x48] sm:$0xff]
        %v695 = vld [vmem:[%s4 + $0x50] sm:$0xff]
        %v696 = vld [vmem:[%s4 + $0x58] sm:$0xff]
        %v697 = vld [vmem:[%s4 + $0x60] sm:$0xff]
        %v698 = vld [vmem:[%s4 + $0x68] sm:$0xff]
        %v699 = vld [vmem:[%s4 + $0x70] sm:$0xff]
        %v700 = vld [vmem:[%s4 + $0x78] sm:$0xff]
        %702 = vset.pattern.permute.xlu0 0
        %703 = vperm.xlu0 %702, %v685
        %v704 = vpop.permute.xlu0 %703
        %707 = vset.pattern.permute.xlu0 0
        %708 = vperm.xlu0 %707, %v686
        %v709 = vpop.permute.xlu0 %708
        %712 = vset.pattern.permute.xlu0 0
        %713 = vperm.xlu0 %712, %v687
        %v714 = vpop.permute.xlu0 %713
        %717 = vset.pattern.permute.xlu0 0
        %718 = vperm.xlu0 %717, %v688
        %v719 = vpop.permute.xlu0 %718
        %722 = vset.pattern.permute.xlu0 0
        %723 = vperm.xlu0 %722, %v689
        %v724 = vpop.permute.xlu0 %723
        %727 = vset.pattern.permute.xlu0 0
        %728 = vperm.xlu0 %727, %v690
        %v729 = vpop.permute.xlu0 %728
        %732 = vset.pattern.permute.xlu0 0
        %733 = vperm.xlu0 %732, %v691
        %v734 = vpop.permute.xlu0 %733
        %737 = vset.pattern.permute.xlu0 0
        %738 = vperm.xlu0 %737, %v692
        %v739 = vpop.permute.xlu0 %738
        %742 = vset.pattern.permute.xlu0 0
        %743 = vperm.xlu0 %742, %v693
        %v744 = vpop.permute.xlu0 %743
        %747 = vset.pattern.permute.xlu0 0
        %748 = vperm.xlu0 %747, %v694
        %v749 = vpop.permute.xlu0 %748
        %752 = vset.pattern.permute.xlu0 0
        %753 = vperm.xlu0 %752, %v695
        %v754 = vpop.permute.xlu0 %753
        %757 = vset.pattern.permute.xlu0 0
        %758 = vperm.xlu0 %757, %v696
        %v759 = vpop.permute.xlu0 %758
        %762 = vset.pattern.permute.xlu0 0
        %763 = vperm.xlu0 %762, %v697
        %v764 = vpop.permute.xlu0 %763
        %767 = vset.pattern.permute.xlu0 0
        %768 = vperm.xlu0 %767, %v698
        %v769 = vpop.permute.xlu0 %768
        %772 = vset.pattern.permute.xlu0 0
        %773 = vperm.xlu0 %772, %v699
        %v774 = vpop.permute.xlu0 %773
        %777 = vset.pattern.permute.xlu0 0
        %778 = vperm.xlu0 %777, %v700
        %v779 = vpop.permute.xlu0 %778
        %v797 = vunpack.c.l.b16 %v661
        %v798 = vunpack.c.l.b16 %v662
        %v799 = vunpack.c.l.b16 %v663
        %v800 = vunpack.c.l.b16 %v664
        %v801 = vunpack.c.l.b16 %v665
        %v802 = vunpack.c.l.b16 %v666
        %v803 = vunpack.c.l.b16 %v667
        %v804 = vunpack.c.l.b16 %v668
        %v805 = vunpack.c.l.b16 %v669
        %v806 = vunpack.c.l.b16 %v670
        %v807 = vunpack.c.l.b16 %v671
        %v808 = vunpack.c.l.b16 %v672
        %v809 = vunpack.c.l.b16 %v673
        %v810 = vunpack.c.l.b16 %v674
        %v811 = vunpack.c.l.b16 %v675
        %v812 = vunpack.c.l.b16 %v676
        %v813 = vpack.c.b16 %v798, %v797
        %v814 = vpack.c.b16 %v800, %v799
        %v815 = vpack.c.b16 %v802, %v801
        %v816 = vpack.c.b16 %v804, %v803
        %v817 = vpack.c.b16 %v806, %v805
        %v818 = vpack.c.b16 %v808, %v807
        %v819 = vpack.c.b16 %v810, %v809
        %v820 = vpack.c.b16 %v812, %v811
        %829 = vmatprep.subr.bf16.mxu0 0
        %830 = vmatpush1.bf16.msra.mxu0 %v677
        %831 = vmatprep.subr.bf16.mxu0 0
        %832 = vmatpush1.bf16.msra.mxu0 %v678
        %833 = vmatprep.subr.bf16.mxu0 0
        %834 = vmatpush1.bf16.msra.mxu0 %v679
        %835 = vmatprep.subr.bf16.mxu0 0
        %836 = vmatpush1.bf16.msra.mxu0 %v680
        %837 = vmatprep.subr.bf16.mxu0 0
        %838 = vmatpush1.bf16.msra.mxu0 %v681
        %839 = vmatprep.subr.bf16.mxu0 0
        %840 = vmatpush1.bf16.msra.mxu0 %v682
        %841 = vmatprep.subr.bf16.mxu0 0
        %842 = vmatpush1.bf16.msra.mxu0 %v683
        %843 = vmatprep.subr.bf16.mxu0 0
        %844 = vmatpush1.bf16.msra.mxu0 %v684
        %845 = vmatprep.subr.bf16.mxu0 0
        %846 = vmatpush1.bf16.msra.mxu0 0
        %847 = vmatprep.subr.bf16.mxu0 0
        %848 = vmatpush1.bf16.msra.mxu0 0
        %849 = vmatprep.subr.bf16.mxu0 0
        %850 = vmatpush1.bf16.msra.mxu0 0
        %851 = vmatprep.subr.bf16.mxu0 0
        %852 = vmatpush1.bf16.msra.mxu0 0
        %853 = vmatprep.subr.bf16.mxu0 0
        %854 = vmatpush1.bf16.msra.mxu0 0
        %855 = vmatprep.subr.bf16.mxu0 0
        %856 = vmatpush1.bf16.msra.mxu0 0
        %857 = vmatprep.subr.bf16.mxu0 0
        %858 = vmatpush1.bf16.msra.mxu0 0
        %859 = vmatprep.subr.bf16.mxu0 0
        %860 = vmatpush1.bf16.msra.mxu0 0
        %861 = vmatprep.mubr.bf16.mxu0 0
        %862 = vmatmul.mubr.bf16.gmra.mrb[0].mxu0 %v813
        %v863 = vpop.f32.mrb[0].mxu0
        %v864 = vadd.f32 %v704, %v863
        %v865 = vpop.f32.mrb[0].mxu0
        %v866 = vpop.f32.mrb[0].mxu0
        %v867 = vadd.f32 %v709, %v866
        %v868 = vpop.f32.mrb[0].mxu0
        %869 = vmatprep.mubr.bf16.mxu0 0
        %870 = vmatmul.mubr.bf16.gmra.mrb[0].mxu0 %v814
        %v871 = vpop.f32.mrb[0].mxu0
        %v872 = vadd.f32 %v714, %v871
        %v873 = vpop.f32.mrb[0].mxu0
        %v874 = vpop.f32.mrb[0].mxu0
        %v875 = vadd.f32 %v719, %v874
        %v876 = vpop.f32.mrb[0].mxu0
        %877 = vmatprep.mubr.bf16.mxu0 0
        %878 = vmatmul.mubr.bf16.gmra.mrb[0].mxu0 %v815
        %v879 = vpop.f32.mrb[0].mxu0
        %v880 = vadd.f32 %v724, %v879
        %v881 = vpop.f32.mrb[0].mxu0
        %v882 = vpop.f32.mrb[0].mxu0
        %v883 = vadd.f32 %v729, %v882
        %v884 = vpop.f32.mrb[0].mxu0
        %885 = vmatprep.mubr.bf16.mxu0 0
        %886 = vmatmul.mubr.bf16.gmra.mrb[0].mxu0 %v816
        %v887 = vpop.f32.mrb[0].mxu0
        %v888 = vadd.f32 %v734, %v887
        %v889 = vpop.f32.mrb[0].mxu0
        %v890 = vpop.f32.mrb[0].mxu0
        %v891 = vadd.f32 %v739, %v890
        %v892 = vpop.f32.mrb[0].mxu0
        %893 = vmatprep.mubr.bf16.mxu0 0
        %894 = vmatmul.mubr.bf16.gmra.mrb[0].mxu0 %v817
        %v895 = vpop.f32.mrb[0].mxu0
        %v896 = vadd.f32 %v744, %v895
        %v897 = vpop.f32.mrb[0].mxu0
        %v898 = vpop.f32.mrb[0].mxu0
        %v899 = vadd.f32 %v749, %v898
        %v900 = vpop.f32.mrb[0].mxu0
        %901 = vmatprep.mubr.bf16.mxu0 0
        %902 = vmatmul.mubr.bf16.gmra.mrb[0].mxu0 %v818
        %v903 = vpop.f32.mrb[0].mxu0
        %v904 = vadd.f32 %v754, %v903
        %v905 = vpop.f32.mrb[0].mxu0
        %v906 = vpop.f32.mrb[0].mxu0
        %v907 = vadd.f32 %v759, %v906
        %v908 = vpop.f32.mrb[0].mxu0
        %909 = vmatprep.mubr.bf16.mxu0 0
        %910 = vmatmul.mubr.bf16.gmra.mrb[0].mxu0 %v819
        %v911 = vpop.f32.mrb[0].mxu0
        %v912 = vadd.f32 %v764, %v911
        %v913 = vpop.f32.mrb[0].mxu0
        %v914 = vpop.f32.mrb[0].mxu0
        %v915 = vadd.f32 %v769, %v914
        %v916 = vpop.f32.mrb[0].mxu0
        %917 = vmatprep.mubr.bf16.mxu0 0
        %918 = vmatmul.mubr.bf16.gmra.mrb[0].mxu0 %v820
        %v919 = vpop.f32.mrb[0].mxu0
        %v920 = vadd.f32 %v774, %v919
        %v921 = vpop.f32.mrb[0].mxu0
        %v922 = vpop.f32.mrb[0].mxu0
        %v923 = vadd.f32 %v779, %v922
        %v924 = vpop.f32.mrb[0].mxu0
        %925 = vdwg.mxu0
        %v926 = vmax.f32 %v864, 0.0
        %v927 = vmax.f32 %v867, 0.0
        %v928 = vmax.f32 %v872, 0.0
        %v929 = vmax.f32 %v875, 0.0
        %v930 = vmax.f32 %v880, 0.0
        %v931 = vmax.f32 %v883, 0.0
        %v932 = vmax.f32 %v888, 0.0
        %v933 = vmax.f32 %v891, 0.0
        %v934 = vmax.f32 %v896, 0.0
        %v935 = vmax.f32 %v899, 0.0
        %v936 = vmax.f32 %v904, 0.0
        %v937 = vmax.f32 %v907, 0.0
        %v938 = vmax.f32 %v912, 0.0
        %v939 = vmax.f32 %v915, 0.0
        %v940 = vmax.f32 %v920, 0.0
        %v941 = vmax.f32 %v923, 0.0
        %v942 = vld [vmem:[%s5] sm:$0xf]
        %v943 = vpack.c.bf16 %v927, %v926
        %v944 = vpack.c.bf16 %v929, %v928
        %v945 = vpack.c.bf16 %v931, %v930
        %v946 = vpack.c.bf16 %v933, %v932
        %v947 = vpack.c.bf16 %v935, %v934
        %v948 = vpack.c.bf16 %v937, %v936
        %v949 = vpack.c.bf16 %v939, %v938
        %v950 = vpack.c.bf16 %v941, %v940
        %v951 = vld [vmem:[%s6] sm:$0xff]
        %953 = vset.pattern.permute.xlu0 0
        %954 = vperm.xlu0 %953, %v951
        %v955 = vpop.permute.xlu0 %954
        %957 = vmatprep.subr.bf16.mxu0 0
        %958 = vmatpush1.bf16.msra.mxu0 %v943
        %959 = vmatprep.subr.bf16.mxu0 0
        %960 = vmatpush1.bf16.msra.mxu0 %v944
        %961 = vmatprep.subr.bf16.mxu0 0
        %962 = vmatpush1.bf16.msra.mxu0 %v945
        %963 = vmatprep.subr.bf16.mxu0 0
        %964 = vmatpush1.bf16.msra.mxu0 %v946
        %965 = vmatprep.subr.bf16.mxu0 0
        %966 = vmatpush1.bf16.msra.mxu0 %v947
        %967 = vmatprep.subr.bf16.mxu0 0
        %968 = vmatpush1.bf16.msra.mxu0 %v948
        %969 = vmatprep.subr.bf16.mxu0 0
        %970 = vmatpush1.bf16.msra.mxu0 %v949
        %971 = vmatprep.subr.bf16.mxu0 0
        %972 = vmatpush1.bf16.msra.mxu0 %v950
        %973 = vmatprep.subr.bf16.mxu0 0
        %974 = vmatpush1.bf16.msra.mxu0 0
        %975 = vmatprep.subr.bf16.mxu0 0
        %976 = vmatpush1.bf16.msra.mxu0 0
        %977 = vmatprep.subr.bf16.mxu0 0
        %978 = vmatpush1.bf16.msra.mxu0 0
        %979 = vmatprep.subr.bf16.mxu0 0
        %980 = vmatpush1.bf16.msra.mxu0 0
        %981 = vmatprep.subr.bf16.mxu0 0
        %982 = vmatpush1.bf16.msra.mxu0 0
        %983 = vmatprep.subr.bf16.mxu0 0
        %984 = vmatpush1.bf16.msra.mxu0 0
        %985 = vmatprep.subr.bf16.mxu0 0
        %986 = vmatpush1.bf16.msra.mxu0 0
        %987 = vmatprep.subr.bf16.mxu0 0
        %988 = vmatpush1.bf16.msra.mxu0 0
        %989 = vmatprep.mubr.bf16.mxu0 0
        %990 = vmatmul.mubr.bf16.gmra.mrb[0].mxu0 %v942
        %v991 = vpop.f32.mrb[0].mxu0
        %v992 = vadd.f32 %v955, %v991
        %v993 = vpop.f32.mrb[0].mxu0
        %v994 = vpop.f32.mrb[0].mxu0
        %v995 = vpop.f32.mrb[0].mxu0
        %996 = vdwg.mxu0
        %v997 = vrot.slane %v992, 4
        %v998 = vmax.f32 %v992, %v997
        %v999 = vrot.slane %v998, 2
        %v1000 = vmax.f32 %v998, %v999
        %v1001 = vrot.slane %v1000, 1
        %v1002 = vmax.f32 %v1000, %v1001
        %v1003 = vsub.f32 %v992, %v1002
        %v1004 = vmul.f32 %v1003, 1.442695
        %v1005 = vpow.pop %v1004
        %v1006 = vrot.slane %v1005, 4
        %v1007 = vadd.f32 %v1005, %v1006
        %v1008 = vrot.slane %v1007, 2
        %v1009 = vadd.f32 %v1007, %v1008
        %v1010 = vrot.slane %v1009, 1
        %v1011 = vadd.f32 %v1009, %v1010
        %v1012 = vlog2.pop %v1011
        %v1013 = vmul.f32 %v1012, 0.6931472
        %v1014 = vsub.f32 %v1003, %v1013
        %v1015 = vlaneseq
        %v1016 = vshrl.u32 %v1015, 7
        %v1017 = vld [vmem:[%s361] sm:$0x1]
        %v1018 = vlaneseq
        %v1019 = vshrl.u32 %v1018, 7
        %v1020 = vsub.s32 0, %v1019
        %v1021 = vrot.slane %v1017, %v1020
        %vm1022 = vcmp.eq.s32.totalorder %v1016, %v1021
        %v1023 = vsel %vm1022, %v1014, 0.0
        %v1024 = vrot.slane %v1023, 4
        %v1025 = vadd.f32 %v1023, %v1024
        %v1026 = vrot.slane %v1025, 2
        %v1027 = vadd.f32 %v1025, %v1026
        %v1028 = vrot.slane %v1027, 1
        %v1029 = vadd.f32 %v1027, %v1028
        %1030 = vst [vmem:[%s358] sm:$0x1] %v1029
        %s1031 = sand.u32 %s208, 1
        %s1032 = scalar_lea.sflag [#allocation4], %s1031
        %s1033 = sand.u32 %s208, 1
        %s1034 = scalar_lea.vmem [#allocation3], %s1033
        // Predicated region
        $region94: #{tpu_custom_call.1} parent=88 // pred_check
          %p1035 = pneg %p218
        $region95: #{tpu_custom_call.1} parent=88 // pred_check_branch
          %1037 = sbr.rel (%p1035) target = $region97
        $region96: #{tpu_custom_call.1} parent=88 // pred_region
          %s1039 = ssub.s32 16, 16
          %1040 = vsyncadd %s1032, %s1039
          %s1041 = smul.addr %s22, 16
          %s1042 = scalar_lea.hbm %s8, %s1041
          %s1044 = sshll.u32 %s1034, 4
          %s1045 = int_to_ptr.vmem [resolvable:$true] %s1044
          %1047 = dma.vmem_to_hbm [thread:$0]  %s1045, 16, %s1042, %s1032
        $region97: #{tpu_custom_call.1} parent=88 // pred_fallthru
          _
      $region89: #{tpu_custom_call.1} parent=5 // pred_fallthru
        _
      %p1048 = scmp.le.s32.totalorder 2, %s17
      // Predicated region
      $region98: #{tpu_custom_call.1} parent=5 // pred_check
        %p1049 = pneg %p1048
      $region99: #{tpu_custom_call.1} parent=5 // pred_check_branch
        %1051 = sbr.rel (%p1049) target = $region101
      $region100: #{tpu_custom_call.1} parent=5 // pred_region
        %s1052 = ssub.s32 %s17, 2
        // Predicated region
        $region102: #{tpu_custom_call.1} parent=100 // pred_check
          %p1053 = pneg %p224
        $region103: #{tpu_custom_call.1} parent=100 // pred_check_branch
          %1055 = sbr.rel (%p1053) target = $region105
        $region104: #{tpu_custom_call.1} parent=100 // pred_region
          %s1056 = sand.u32 %s209, 1
          %s1057 = scalar_lea.sflag [#allocation4], %s1056
          %s1058 = sand.u32 %s209, 1
          %s1059 = scalar_lea.vmem [#allocation3], %s1058
          %1060 = dma.done %s1057, 16
        $region105: #{tpu_custom_call.1} parent=100 // pred_fallthru
          _
      $region101: #{tpu_custom_call.1} parent=5 // pred_fallthru
        _
    $region6: #{tpu_custom_call.1} parent=1 // loop_footer
      %s21 = sadd.s32 1, %s17
    $region7: #{tpu_custom_call.1} parent=1 // loop_footer_branch
      %16 = sbr.rel target = $region3
    $region8: #{tpu_custom_call.1} parent=1 // loop_exit
      _
    %1061 = vsyncpa [#allocation4], 1
    %s1062 = scalar_lea.sflag [#allocation4], 1
    %1063 = vsyncpa %s1062, 1

</llo_original>
